<compile_context>
chip_gen: v5e
topology: v5e:2x2
jax: 0.10.0
libtpu: 0.0.40
codegen_flags: <defaults>
</compile_context>

<pallas_src>
import functools

import jax
import jax.numpy as jnp
from jax.experimental import pallas as pl
from jax.experimental.pallas import tpu as pltpu

GAMMA = 2.0
SMOOTH = 1e-5
LANE = 128


def _focal_loss_kernel(logit_ref, target_ref, out_ref, *, gamma, smooth, num_class,
                       num_rows, tile_s, alpha_vals, need_row_mask):
    ti = pl.program_id(1)

    tgt = target_ref[0, 0]                       # (S, 128) int32
    lo = (smooth / (num_class - 1)) if num_class > 1 else 0.0
    hi = 1.0 - smooth

    # Dense per-class loop: "gather" of logit at target class, row-sum over classes,
    # and (optionally) alpha at target class, all on full (S, 128) vregs.
    row_sum = None
    gathered = None
    alpha_t = None
    for c_idx in range(num_class):
        lc = logit_ref[0, c_idx].astype(jnp.float32)          # (S, 128)
        hit = tgt == c_idx
        g_c = jnp.where(hit, lc, 0.0)
        row_sum = lc if row_sum is None else row_sum + lc
        gathered = g_c if gathered is None else gathered + g_c
        if alpha_vals is not None:
            a_c = jnp.where(hit, jnp.float32(alpha_vals[c_idx]), 0.0)
            alpha_t = a_c if alpha_t is None else alpha_t + a_c

    # smoothed one-hot dot:  clamp(one_hot, lo, hi) . logit
    #   = lo * sum_c(logit) + (hi - lo) * logit[target]
    pt = lo * row_sum + (hi - lo) * gathered + smooth          # (S, 128)

    # Mask rows past num_rows only for partial last tiles (static decision).
    # The select comes BEFORE log/pow so garbage in the padded block cannot propagate NaN.
    if need_row_mask:
        row = jax.lax.broadcasted_iota(jnp.int32, pt.shape, 0)
        valid = (ti * tile_s + row) < num_rows
        pt = jnp.where(valid, pt, 1.0)                         # logpt=0, (1-pt)=0

    logpt = jnp.log(pt)
    one_minus_pt = 1.0 - pt

    g = float(gamma)
    if g == 2.0:                                   # default: plain VPU square, NaN-safe
        focal = one_minus_pt * one_minus_pt
    elif g == float(int(g)) and g >= 0.0:          # other small integer gammas
        focal = jnp.ones_like(one_minus_pt)
        for _ in range(int(g)):
            focal = focal * one_minus_pt
    else:                                          # non-integer gamma: EUP power, clamped
        focal = jnp.power(jnp.maximum(one_minus_pt, 0.0), g)

    if alpha_vals is None:
        loss = -(focal * logpt)
    else:
        loss = -(alpha_t * focal * logpt)

    # Sublane reduce (S,128) -> (1,128) lane-wise partial; accumulate into the resident
    # per-image output block (row-tile axis is "arbitrary", same block index across ti).
    partial = jnp.sum(loss, axis=0, keepdims=True)             # (1, 128)

    @pl.when(ti == 0)
    def _():
        out_ref[...] = jnp.zeros_like(out_ref)

    out_ref[...] += partial[None]                              # (1, 1, 128)


def focal_loss(logit_nchw, target, *, apply_nonlin=None, alpha=None, gamma=GAMMA,
               balance_index=0, smooth=SMOOTH, size_average=True, tile_rows=256):
    """Pallas TPU implementation of FocalLoss.forward."""
    if smooth is not None and (smooth < 0 or smooth > 1.0):
        raise ValueError('smooth value should be in [0,1]')
    smooth = 0.0 if smooth is None else float(smooth)

    if apply_nonlin is not None:
        # TODO(synk): arbitrary apply_nonlin runs as plain JAX outside the Pallas kernel.
        logit_nchw = apply_nonlin(logit_nchw)

    n, c, h, w = logit_nchw.shape
    hw = h * w
    m = n * hw

    # free reshapes (no transpose); kernel upcasts to f32 internally, so bf16 logits are
    # accepted (halves HBM read traffic, useful on v5e).
    logit = logit_nchw.reshape(n, c, hw)
    if target.ndim == 4 and target.shape[1] == 1:
        target = target.reshape(n, h, w)
    target = target.reshape(n, 1, hw)
    if target.dtype != jnp.int32:
        target = target.astype(jnp.int32)

    # alpha handling (matches the torch module); static kernel constants
    if alpha is None:
        alpha_vals = None
    elif isinstance(alpha, float):
        vals = [1.0 - alpha] * c
        vals[balance_index] = alpha
        alpha_vals = tuple(vals)
    elif hasattr(alpha, '__len__'):
        vals = [float(v) for v in alpha]
        s = sum(vals)
        alpha_vals = tuple(v / s for v in vals)
    else:
        raise TypeError('Unsupported alpha type')

    # Pad HW to a multiple of 128 only when needed. Pad values are loss-neutral:
    #   logit = 1 - smooth, target = 0  =>  pt = 1 exactly => logpt = 0, (1-pt) = 0.
    hw_pad = ((hw + LANE - 1) // LANE) * LANE
    if hw_pad != hw:
        logit = jnp.pad(logit, ((0, 0), (0, 0), (0, hw_pad - hw)),
                        constant_values=1.0 - smooth)
        target = jnp.pad(target, ((0, 0), (0, 0), (0, hw_pad - hw)),
                         constant_values=0)
    num_rows = hw_pad // LANE

    logit = logit.reshape(n, c, num_rows, LANE)
    target = target.reshape(n, 1, num_rows, LANE)

    # Tile selection over the sublane (row) axis: big tiles (~32K pixels default),
    # always (8,128)-legal (multiple of 8 or full extent).
    tile_rows = int(tile_rows)
    if num_rows <= tile_rows:
        tile_s = num_rows                       # full extent -> always legal
        if n == 1 and num_rows >= 16 and num_rows % 16 == 0:
            tile_s = num_rows // 2              # keep >=2 grid points for v7x's two TCs
    else:
        tile_s = max(8, (tile_rows // 8) * 8)
    n_tiles = pl.cdiv(num_rows, tile_s)
    need_row_mask = (num_rows % tile_s) != 0

    kernel = functools.partial(
        _focal_loss_kernel, gamma=float(gamma), smooth=smooth, num_class=c,
        num_rows=num_rows, tile_s=tile_s, alpha_vals=alpha_vals,
        need_row_mask=need_row_mask)

    partials = pl.pallas_call(
        kernel,
        out_shape=jax.ShapeDtypeStruct((n, 1, LANE), jnp.float32),
        grid_spec=pltpu.PrefetchScalarGridSpec(
            num_scalar_prefetch=0,
            grid=(n, n_tiles),
            in_specs=[
                pl.BlockSpec((1, c, tile_s, LANE), lambda ni, ti: (ni, 0, ti, 0)),
                pl.BlockSpec((1, 1, tile_s, LANE), lambda ni, ti: (ni, 0, ti, 0)),
            ],
            out_specs=pl.BlockSpec((1, 1, LANE), lambda ni, ti: (ni, 0, 0)),
        ),
        compiler_params=pltpu.CompilerParams(
            dimension_semantics=("parallel", "arbitrary"),
        ),
    )(logit, target)

    total = jnp.sum(partials)
    return total / m if size_average else total


def _reference_focal_loss(logit_nchw, target_nhw, gamma=GAMMA, smooth=SMOOTH, alpha=None):
    """Pure-JAX mirror of the PyTorch forward (apply_nonlin=None)."""
    n, c, h, w = logit_nchw.shape
    m = n * h * w
    logit = logit_nchw.reshape(n, c, h * w).transpose(0, 2, 1).reshape(m, c).astype(jnp.float32)
    target = target_nhw.reshape(m)
    one_hot = jax.nn.one_hot(target, c, dtype=jnp.float32)
    one_hot = jnp.clip(one_hot, smooth / (c - 1), 1.0 - smooth)
    pt = jnp.sum(one_hot * logit, axis=1) + smooth
    logpt = jnp.log(pt)
    if alpha is None:
        alpha_t = jnp.ones_like(pt)
    else:
        av = jnp.asarray(alpha, jnp.float32)
        av = av / av.sum()
        alpha_t = av[target]
    loss = -1.0 * alpha_t * jnp.power(1.0 - pt, gamma) * logpt
    return jnp.mean(loss)


if __name__ == "__main__":
    key = jax.random.PRNGKey(0)
    k1, k2, k3, k4 = jax.random.split(key, 4)

    # Primary check: module defaults (alpha=None, gamma=2, smooth=1e-5, size_average=True).
    N, C, H, W = 2, 4, 16, 16
    raw = jax.random.normal(k1, (N, C, H, W), dtype=jnp.float32)
    probs = jax.nn.softmax(raw, axis=1)   # apply_nonlin=None: feed probabilities so log(pt) is defined
    targets = jax.random.randint(k2, (N, H, W), 0, C, dtype=jnp.int32)

    out = jax.block_until_ready(focal_loss(probs, targets))
    ref = _reference_focal_loss(probs, targets)
    assert jnp.allclose(out, ref, rtol=1e-5, atol=1e-6), (out, ref)

    # Secondary check: non-128-divisible spatial size (padded, loss-neutral) + list alpha.
    N2, C2, H2, W2 = 2, 4, 10, 15
    raw2 = jax.random.normal(k3, (N2, C2, H2, W2), dtype=jnp.float32)
    probs2 = jax.nn.softmax(raw2, axis=1)
    targets2 = jax.random.randint(k4, (N2, H2, W2), 0, C2, dtype=jnp.int32)
    alpha_list = [1.0, 2.0, 3.0, 4.0]
    out2 = jax.block_until_ready(focal_loss(probs2, targets2, alpha=alpha_list))
    ref2 = _reference_focal_loss(probs2, targets2, alpha=alpha_list)
    assert jnp.allclose(out2, ref2, rtol=1e-5, atol=1e-6), (out2, ref2)

    print("KERNEL_OK")
</pallas_src>

<mosaic_0001>
module attributes {stable_mosaic.version = 11 : i64} {
  func.func @_focal_loss_kernel(%arg0: i32, %arg1: i32, %arg2: memref<1x4x2x128xf32, #tpu.memory_space<vmem>>, %arg3: memref<1x1x2x128xi32, #tpu.memory_space<vmem>>, %arg4: memref<1x1x128xf32, #tpu.memory_space<vmem>>) attributes {dimension_semantics = [#tpu.dimension_semantics<parallel>, #tpu.dimension_semantics<arbitrary>], iteration_bounds = array<i64: 2, 1>, scalar_prefetch = 0 : i64, scratch_operands = 0 : i64, tpu.core_type = #tpu.core_type<tc>, window_params = [{transform_indices = @transform_0, window_bounds = array<i64: 1, 4, 2, 128>}, {transform_indices = @transform_1, window_bounds = array<i64: 1, 1, 2, 128>}, {transform_indices = @transform_2, window_bounds = array<i64: 1, 1, 128>}]} {
    %c0 = arith.constant 0 : index
    %c0_0 = arith.constant 0 : index
    %c0_1 = arith.constant 0 : index
    %c0_2 = arith.constant 0 : index
    %0 = vector.load %arg3[%c0, %c0_0, %c0_1, %c0_2] : memref<1x1x2x128xi32, #tpu.memory_space<vmem>>, vector<1x1x2x128xi32>
    %1 = vector.shape_cast %0 : vector<1x1x2x128xi32> to vector<2x128xi32>
    %c0_3 = arith.constant 0 : index
    %c0_4 = arith.constant 0 : index
    %c0_5 = arith.constant 0 : index
    %c0_6 = arith.constant 0 : index
    %2 = vector.load %arg2[%c0_3, %c0_4, %c0_5, %c0_6] : memref<1x4x2x128xf32, #tpu.memory_space<vmem>>, vector<1x1x2x128xf32>
    %3 = vector.shape_cast %2 : vector<1x1x2x128xf32> to vector<2x128xf32>
    %c0_i32 = arith.constant 0 : i32
    %4 = vector.broadcast %c0_i32 : i32 to vector<2x128xi32>
    %5 = arith.cmpi eq, %1, %4 : vector<2x128xi32>
    %cst = arith.constant 0.000000e+00 : f32
    %6 = vector.broadcast %cst : f32 to vector<2x128xf32>
    %7 = arith.select %5, %3, %6 : vector<2x128xi1>, vector<2x128xf32>
    %c0_7 = arith.constant 0 : index
    %c1 = arith.constant 1 : index
    %c0_8 = arith.constant 0 : index
    %c0_9 = arith.constant 0 : index
    %8 = vector.load %arg2[%c0_7, %c1, %c0_8, %c0_9] : memref<1x4x2x128xf32, #tpu.memory_space<vmem>>, vector<1x1x2x128xf32>
    %9 = vector.shape_cast %8 : vector<1x1x2x128xf32> to vector<2x128xf32>
    %c1_i32 = arith.constant 1 : i32
    %10 = vector.broadcast %c1_i32 : i32 to vector<2x128xi32>
    %11 = arith.cmpi eq, %1, %10 : vector<2x128xi32>
    %cst_10 = arith.constant 0.000000e+00 : f32
    %12 = vector.broadcast %cst_10 : f32 to vector<2x128xf32>
    %13 = arith.select %11, %9, %12 : vector<2x128xi1>, vector<2x128xf32>
    %14 = arith.addf %3, %9 : vector<2x128xf32>
    %15 = arith.addf %7, %13 : vector<2x128xf32>
    %c0_11 = arith.constant 0 : index
    %c2 = arith.constant 2 : index
    %c0_12 = arith.constant 0 : index
    %c0_13 = arith.constant 0 : index
    %16 = vector.load %arg2[%c0_11, %c2, %c0_12, %c0_13] : memref<1x4x2x128xf32, #tpu.memory_space<vmem>>, vector<1x1x2x128xf32>
    %17 = vector.shape_cast %16 : vector<1x1x2x128xf32> to vector<2x128xf32>
    %c2_i32 = arith.constant 2 : i32
    %18 = vector.broadcast %c2_i32 : i32 to vector<2x128xi32>
    %19 = arith.cmpi eq, %1, %18 : vector<2x128xi32>
    %cst_14 = arith.constant 0.000000e+00 : f32
    %20 = vector.broadcast %cst_14 : f32 to vector<2x128xf32>
    %21 = arith.select %19, %17, %20 : vector<2x128xi1>, vector<2x128xf32>
    %22 = arith.addf %14, %17 : vector<2x128xf32>
    %23 = arith.addf %15, %21 : vector<2x128xf32>
    %c0_15 = arith.constant 0 : index
    %c3 = arith.constant 3 : index
    %c0_16 = arith.constant 0 : index
    %c0_17 = arith.constant 0 : index
    %24 = vector.load %arg2[%c0_15, %c3, %c0_16, %c0_17] : memref<1x4x2x128xf32, #tpu.memory_space<vmem>>, vector<1x1x2x128xf32>
    %25 = vector.shape_cast %24 : vector<1x1x2x128xf32> to vector<2x128xf32>
    %c3_i32 = arith.constant 3 : i32
    %26 = vector.broadcast %c3_i32 : i32 to vector<2x128xi32>
    %27 = arith.cmpi eq, %1, %26 : vector<2x128xi32>
    %cst_18 = arith.constant 0.000000e+00 : f32
    %28 = vector.broadcast %cst_18 : f32 to vector<2x128xf32>
    %29 = arith.select %27, %25, %28 : vector<2x128xi1>, vector<2x128xf32>
    %30 = arith.addf %22, %25 : vector<2x128xf32>
    %31 = arith.addf %23, %29 : vector<2x128xf32>
    %cst_19 = arith.constant 3.33333332E-6 : f32
    %32 = vector.broadcast %cst_19 : f32 to vector<2x128xf32>
    %33 = arith.mulf %32, %30 : vector<2x128xf32>
    %cst_20 = arith.constant 0.999986648 : f32
    %34 = vector.broadcast %cst_20 : f32 to vector<2x128xf32>
    %35 = arith.mulf %34, %31 : vector<2x128xf32>
    %36 = arith.addf %33, %35 : vector<2x128xf32>
    %cst_21 = arith.constant 9.99999974E-6 : f32
    %37 = vector.broadcast %cst_21 : f32 to vector<2x128xf32>
    %38 = arith.addf %36, %37 : vector<2x128xf32>
    %39 = math.log %38 : vector<2x128xf32>
    %cst_22 = arith.constant 1.000000e+00 : f32
    %40 = vector.broadcast %cst_22 : f32 to vector<2x128xf32>
    %41 = arith.subf %40, %38 : vector<2x128xf32>
    %42 = arith.mulf %41, %41 : vector<2x128xf32>
    %43 = arith.mulf %42, %39 : vector<2x128xf32>
    %cst_23 = arith.constant 0.000000e+00 : f32
    %44 = vector.broadcast %cst_23 : f32 to vector<2x128xf32>
    %45 = arith.subf %44, %43 : vector<2x128xf32>
    %cst_24 = arith.constant dense<0.000000e+00> : vector<128xf32>
    %46 = vector.multi_reduction <add>, %45, %cst_24 [0] : vector<2x128xf32> to vector<128xf32>
    %47 = vector.shape_cast %46 : vector<128xf32> to vector<1x128xf32>
    %c0_i32_25 = arith.constant 0 : i32
    %48 = arith.cmpi eq, %arg1, %c0_i32_25 : i32
    %49 = arith.extui %48 : i1 to i32
    %c0_i32_26 = arith.constant 0 : i32
    %50 = arith.cmpi ne, %49, %c0_i32_26 : i32
    scf.if %50 {
      %cst_33 = arith.constant 0.000000e+00 : f32
      %55 = vector.broadcast %cst_33 : f32 to vector<1x1x128xf32>
      %c0_34 = arith.constant 0 : index
      %c0_35 = arith.constant 0 : index
      %c0_36 = arith.constant 0 : index
      %56 = vector.load %arg4[%c0_34, %c0_35, %c0_36] : memref<1x1x128xf32, #tpu.memory_space<vmem>>, vector<1x1x128xf32>
      tpu.vector_store %arg4[%c0_34, %c0_35, %c0_36], %55 {strides = array<i32>} : memref<1x1x128xf32, #tpu.memory_space<vmem>>, vector<1x1x128xf32>,
    } else {
    }
    %c0_27 = arith.constant 0 : index
    %c0_28 = arith.constant 0 : index
    %c0_29 = arith.constant 0 : index
    %51 = vector.load %arg4[%c0_27, %c0_28, %c0_29] : memref<1x1x128xf32, #tpu.memory_space<vmem>>, vector<1x1x128xf32>
    %52 = vector.shape_cast %47 : vector<1x128xf32> to vector<1x1x128xf32>
    %53 = arith.addf %51, %52 : vector<1x1x128xf32>
    %c0_30 = arith.constant 0 : index
    %c0_31 = arith.constant 0 : index
    %c0_32 = arith.constant 0 : index
    %54 = vector.load %arg4[%c0_30, %c0_31, %c0_32] : memref<1x1x128xf32, #tpu.memory_space<vmem>>, vector<1x1x128xf32>
    tpu.vector_store %arg4[%c0_30, %c0_31, %c0_32], %53 {strides = array<i32>} : memref<1x1x128xf32, #tpu.memory_space<vmem>>, vector<1x1x128xf32>,
    return
  }
  func.func @transform_0(%arg0: i32, %arg1: i32) -> (i32, i32, i32, i32) {
    %c0_i32 = arith.constant 0 : i32
    %c0_i32_0 = arith.constant 0 : i32
    %c0_i32_1 = arith.constant 0 : i32
    return %arg0, %c0_i32, %arg1, %c0_i32_0 : i32, i32, i32, i32
  }
  func.func @transform_1(%arg0: i32, %arg1: i32) -> (i32, i32, i32, i32) {
    %c0_i32 = arith.constant 0 : i32
    %c0_i32_0 = arith.constant 0 : i32
    %c0_i32_1 = arith.constant 0 : i32
    return %arg0, %c0_i32, %arg1, %c0_i32_0 : i32, i32, i32, i32
  }
  func.func @transform_2(%arg0: i32, %arg1: i32) -> (i32, i32, i32) {
    %c0_i32 = arith.constant 0 : i32
    %c0_i32_0 = arith.constant 0 : i32
    %c0_i32_1 = arith.constant 0 : i32
    return %arg0, %c0_i32, %c0_i32_0 : i32, i32, i32
  }
}

</mosaic_0001>

<llo_original>
// kernel: tpu_custom_call.1
$region0: #{tpu_custom_call.1}
  #allocation0 [shape = 'u32[]', space=smem, size = 0x4, offset = 0x4, fixed_abs, tag = 'smem constant byte address 0x4 - core index']
  #allocation1 [shape = 'u32[72,128]{1,0:T(1,128)}', space=vmem, size = 0x9000, scoped, tag = 'internal scratch']
  %s0 = inlined_call_operand.hbm [shape: f32[2,4,2,128], index: 0, kind: input, shape index: {}]
  %s1 = inlined_call_operand.hbm [shape: s32[2,1,2,128], index: 1, kind: input, shape index: {}]
  %s2 = inlined_call_operand.hbm [shape: f32[2,1,128], index: 2, kind: output, shape index: {}]
  %s3 = sld [smem:[#allocation0]]
  $region53: #{tpu_custom_call.1} parent=0
    _
  %s5 = ssub.s32 1, %s3
  %s6 = scalar_select 0, %s5, %s3
  $region1: #{tpu_custom_call.1} parent=0
    #allocation2 [shape = 'u8[8192]{0}', space=vmem, size = 0x2000, scoped, tag = 'input window, operand 0']
    #allocation3 [shape = 's32[2]{0}', space=sflag, size = 0x8, scoped, tag = 'scoped memory for tpu_custom_call.1']
    #allocation4 [shape = 's32[2]{0}', space=sflag, size = 0x8, scoped, tag = 'scoped memory for tpu_custom_call.1']
    #allocation5 [shape = 'u8[2048]{0}', space=vmem, size = 0x800, scoped, tag = 'input window, operand 1']
    #allocation6 [shape = 's32[2]{0}', space=sflag, size = 0x8, scoped, tag = 'scoped memory for tpu_custom_call.1']
    #allocation7 [shape = 'u8[1024]{0}', space=vmem, size = 0x400, scoped, tag = 'output window, operand 0']
    %7 = vsyncpa [#allocation3], 0
    %s8 = scalar_lea.sflag [#allocation3], 1
    %9 = vsyncpa %s8, 0
    %10 = vsyncpa [#allocation6], 0
    %s11 = scalar_lea.sflag [#allocation6], 1
    %12 = vsyncpa %s11, 0
    %13 = vsyncpa [#allocation4], 0
    %s14 = scalar_lea.sflag [#allocation4], 1
    %15 = vsyncpa %s14, 0
    loop: start=0, step=1, limit=4
    $region2: #{tpu_custom_call.1} parent=1 // loop_pre_header
      _
    $region3: #{tpu_custom_call.1} parent=1 // loop_header
      %s17 = sphi 0, %s21
      %p18 = scmp.ge.s32.totalorder %s17, 4
      %s24 = sphi 0, %s36
      %s25 = sphi 0, %s32
      %s26 = sphi 0, %s24
      %s27 = sphi 0, %s25
      %s28 = sphi 0, %s26
      %s29 = sphi 0, %s27
      %s41 = sphi 0, %s43
      %s44 = sphi 0, %s41
      %s45 = sphi 0, %s44
      %s61 = sphi 0, %s45
      %s69 = sphi 0, %s71
      %s72 = sphi 0, %s69
      %s73 = sphi 0, %s72
      %s89 = sphi 0, %s73
      %s95 = sphi 0, %s97
      %s98 = sphi 0, %s95
      %s99 = sphi 0, %s98
      %s115 = sphi 0, %s99
    $region4: #{tpu_custom_call.1} parent=1 // loop_header_branch
      %20 = sbr.rel (%p18) target = $region8
    $region5: #{tpu_custom_call.1} parent=1 // loop_body
      %s22 = ssub.s32 %s17, 1
      %s23 = ssub.s32 %s17, 2
      %s30 = sadd.s32 1, %s25
      %p31 = scmp.ge.s32.totalorder %s30, 1
      %s32 = scalar_select %p31, 0, %s30
      %s33 = sadd.s32 1, %s24
      %s34 = scalar_select %p31, %s33, %s24
      %p35 = scmp.ge.s32.totalorder %s34, 2
      %s36 = scalar_select %p35, 0, %s34
      %s37 = ssub.s32 %s24, %s36
      %s38 = ssub.s32 %s25, %s32
      %s39 = sor.u32 %s37, %s38
      %p40 = scmp.eq.s32.totalorder %s39, 0
      %s42 = sadd.s32 %s41, 1
      %s43 = scalar_select %p40, %s41, %s42
      %p46 = pneg %p40
      %p47 = scmp.eq.s32.totalorder %s17, 1
      %p48 = por %p46, %p47
      %p49 = scmp.ne.s32.totalorder %s41, %s44
      %p50 = scmp.eq.s32.totalorder %s17, 0
      %p51 = por %p49, %p50
      %p52 = scmp.ne.s32.totalorder %s41, %s44
      %p53 = scmp.eq.s32.totalorder %s22, 1
      %p54 = por %p52, %p53
      %p55 = scmp.ne.s32.totalorder %s44, %s45
      %p56 = scmp.eq.s32.totalorder %s22, 0
      %p57 = por %p55, %p56
      %p58 = scmp.ne.s32.totalorder %s44, %s45
      %p59 = scmp.eq.s32.totalorder %s23, 1
      %p60 = por %p58, %p59
      %p62 = scmp.ne.s32.totalorder %s45, %s61
      %p63 = scmp.eq.s32.totalorder %s23, 0
      %p64 = por %p62, %p63
      %s65 = ssub.s32 %s24, %s36
      %s66 = ssub.s32 %s25, %s32
      %s67 = sor.u32 %s65, %s66
      %p68 = scmp.eq.s32.totalorder %s67, 0
      %s70 = sadd.s32 %s69, 1
      %s71 = scalar_select %p68, %s69, %s70
      %p74 = pneg %p68
      %p75 = scmp.eq.s32.totalorder %s17, 1
      %p76 = por %p74, %p75
      %p77 = scmp.ne.s32.totalorder %s69, %s72
      %p78 = scmp.eq.s32.totalorder %s17, 0
      %p79 = por %p77, %p78
      %p80 = scmp.ne.s32.totalorder %s69, %s72
      %p81 = scmp.eq.s32.totalorder %s22, 1
      %p82 = por %p80, %p81
      %p83 = scmp.ne.s32.totalorder %s72, %s73
      %p84 = scmp.eq.s32.totalorder %s22, 0
      %p85 = por %p83, %p84
      %p86 = scmp.ne.s32.totalorder %s72, %s73
      %p87 = scmp.eq.s32.totalorder %s23, 1
      %p88 = por %p86, %p87
      %p90 = scmp.ne.s32.totalorder %s73, %s89
      %p91 = scmp.eq.s32.totalorder %s23, 0
      %p92 = por %p90, %p91
      %s93 = ssub.s32 %s24, %s36
      %p94 = scmp.eq.s32.totalorder %s93, 0
      %s96 = sadd.s32 %s95, 1
      %s97 = scalar_select %p94, %s95, %s96
      %p100 = pneg %p94
      %p101 = scmp.eq.s32.totalorder %s17, 1
      %p102 = por %p100, %p101
      %p103 = scmp.ne.s32.totalorder %s95, %s98
      %p104 = scmp.eq.s32.totalorder %s17, 0
      %p105 = por %p103, %p104
      %p106 = scmp.ne.s32.totalorder %s95, %s98
      %p107 = scmp.eq.s32.totalorder %s22, 1
      %p108 = por %p106, %p107
      %p109 = scmp.ne.s32.totalorder %s98, %s99
      %p110 = scmp.eq.s32.totalorder %s22, 0
      %p111 = por %p109, %p110
      %p112 = scmp.ne.s32.totalorder %s98, %s99
      %p113 = scmp.eq.s32.totalorder %s23, 1
      %p114 = por %p112, %p113
      %p116 = scmp.ne.s32.totalorder %s99, %s115
      %p117 = scmp.eq.s32.totalorder %s23, 0
      %p118 = por %p116, %p117
      %p119 = scmp.le.s32.totalorder 1, %s17
      %p120 = scmp.lt.s32.totalorder %s17, 3
      %p121 = pnand %p119, %p120
      %p122 = pneg %p121
      // Predicated region
      $region9: #{tpu_custom_call.1} parent=5 // pred_check
        _
      $region10: #{tpu_custom_call.1} parent=5 // pred_check_branch
        %124 = sbr.rel (%p121) target = $region12
      $region11: #{tpu_custom_call.1} parent=5 // pred_region
        %s125 = ssub.s32 %s17, 1
      $region12: #{tpu_custom_call.1} parent=5 // pred_fallthru
        _
      %p126 = scmp.lt.s32.totalorder %s17, 2
      // Predicated region
      $region13: #{tpu_custom_call.1} parent=5 // pred_check
        %p127 = pneg %p126
      $region14: #{tpu_custom_call.1} parent=5 // pred_check_branch
        %129 = sbr.rel (%p127) target = $region16
      $region15: #{tpu_custom_call.1} parent=5 // pred_region
        // Predicated region
        $region17: #{tpu_custom_call.1} parent=15 // pred_check
          %p130 = pneg %p51
        $region18: #{tpu_custom_call.1} parent=15 // pred_check_branch
          %132 = sbr.rel (%p130) target = $region20
        $region19: #{tpu_custom_call.1} parent=15 // pred_region
          %s133 = sand.u32 %s41, 1
          %s134 = scalar_lea.sflag [#allocation3], %s133
          %s135 = sand.u32 %s41, 1
          %s136 = smul.addr %s135, 8
          %s137 = scalar_lea.vmem [#allocation2], %s136
          %139 = vsyncadd %s134, 0
          %s140 = smul.addr %s24, 4
          %s141 = sadd.s32 %s25, %s140
          %s142 = smul.addr %s141, 2
          %s143 = scalar_lea.hbm %s0, %s142
          %s144 = sshll.u32 %s143, 4
          %s145 = int_to_ptr.hbm [resolvable:$true] %s144
          %s146 = sshll.u32 %s137, 4
          %s147 = int_to_ptr.vmem [resolvable:$true] %s146
          %152 = dma.hbm_to_vmem [thread:$0]  %s145, 128, %s147, %s134, 32, 32, 2
        $region20: #{tpu_custom_call.1} parent=15 // pred_fallthru
          _
        // Predicated region
        $region21: #{tpu_custom_call.1} parent=15 // pred_check
          %p153 = pneg %p79
        $region22: #{tpu_custom_call.1} parent=15 // pred_check_branch
          %155 = sbr.rel (%p153) target = $region24
        $region23: #{tpu_custom_call.1} parent=15 // pred_region
          %s156 = sand.u32 %s69, 1
          %s157 = scalar_lea.sflag [#allocation6], %s156
          %s158 = sand.u32 %s69, 1
          %s159 = smul.addr %s158, 2
          %s160 = scalar_lea.vmem [#allocation5], %s159
          %162 = vsyncadd %s157, 0
          %s163 = sadd.s32 %s25, %s24
          %s164 = smul.addr %s163, 2
          %s165 = scalar_lea.hbm %s1, %s164
          %s167 = sshll.u32 %s165, 4
          %s168 = int_to_ptr.hbm [resolvable:$true] %s167
          %s169 = sshll.u32 %s160, 4
          %s170 = int_to_ptr.vmem [resolvable:$true] %s169
          %172 = dma.hbm_to_vmem [thread:$0]  %s168, 32, %s170, %s157
        $region24: #{tpu_custom_call.1} parent=15 // pred_fallthru
          _
      $region16: #{tpu_custom_call.1} parent=5 // pred_fallthru
        _
      %p173 = scmp.le.s32.totalorder 1, %s17
      %p174 = scmp.lt.s32.totalorder %s17, 3
      %p175 = pnand %p173, %p174
      %p176 = pneg %p175
      // Predicated region
      $region25: #{tpu_custom_call.1} parent=5 // pred_check
        _
      $region26: #{tpu_custom_call.1} parent=5 // pred_check_branch
        %178 = sbr.rel (%p175) target = $region28
      $region27: #{tpu_custom_call.1} parent=5 // pred_region
        %s179 = ssub.s32 %s17, 1
        %s180 = sand.u32 %s44, 1
        %s181 = scalar_lea.sflag [#allocation3], %s180
        %s182 = sand.u32 %s44, 1
        %s183 = smul.addr %s182, 8
        %s184 = scalar_lea.vmem [#allocation2], %s183
        // Predicated region
        $region29: #{tpu_custom_call.1} parent=27 // pred_check
          %p185 = pneg %p57
        $region30: #{tpu_custom_call.1} parent=27 // pred_check_branch
          %187 = sbr.rel (%p185) target = $region32
        $region31: #{tpu_custom_call.1} parent=27 // pred_region
          %189 = dma.done %s181, 128
        $region32: #{tpu_custom_call.1} parent=27 // pred_fallthru
          _
        %s190 = sand.u32 %s72, 1
        %s191 = scalar_lea.sflag [#allocation6], %s190
        %s192 = sand.u32 %s72, 1
        %s193 = smul.addr %s192, 2
        %s194 = scalar_lea.vmem [#allocation5], %s193
        // Predicated region
        $region33: #{tpu_custom_call.1} parent=27 // pred_check
          %p195 = pneg %p85
        $region34: #{tpu_custom_call.1} parent=27 // pred_check_branch
          %197 = sbr.rel (%p195) target = $region36
        $region35: #{tpu_custom_call.1} parent=27 // pred_region
          %199 = dma.done %s191, 32
        $region36: #{tpu_custom_call.1} parent=27 // pred_fallthru
          _
        %s200 = sand.u32 %s44, 1
        %s201 = scalar_lea.sflag [#allocation3], %s200
        %s202 = sand.u32 %s44, 1
        %s203 = smul.addr %s202, 8
        %s204 = scalar_lea.vmem [#allocation2], %s203
        %p205 = pneg %p57
        %p206 = pneg %p54
        %s207 = sand.u32 %s72, 1
        %s208 = scalar_lea.sflag [#allocation6], %s207
        %s209 = sand.u32 %s72, 1
        %s210 = smul.addr %s209, 2
        %s211 = scalar_lea.vmem [#allocation5], %s210
        %p212 = pneg %p85
        %p213 = pneg %p82
        %p214 = pneg %p111
        %p215 = pneg %p108
        %s216 = sand.u32 %s98, 1
        %s217 = scalar_lea.sflag [#allocation4], %s216
        %s218 = sand.u32 %s98, 1
        %s219 = scalar_lea.vmem [#allocation7], %s218
        %v220 = vld [vmem:[%s194] sm:$0x3]
        %v221 = vld [vmem:[%s184] sm:$0x3]
        %vm222 = vcmp.eq.s32.totalorder %v220, 0
        %v223 = vsel %vm222, %v221, 0.0
        %s224 = scalar_lea.vmem %s184, 2 [#allocation2]
        %v225 = vld [vmem:[%s224] sm:$0x3]
        %vm226 = vcmp.eq.s32.totalorder %v220, 1
        %v227 = vsel %vm226, %v225, 0.0
        %v228 = vadd.f32 %v221, %v225
        %v229 = vadd.f32 %v223, %v227
        %s230 = scalar_lea.vmem %s184, 4 [#allocation2]
        %v231 = vld [vmem:[%s230] sm:$0x3]
        %vm232 = vcmp.eq.s32.totalorder %v220, 2
        %v233 = vsel %vm232, %v231, 0.0
        %v234 = vadd.f32 %v228, %v231
        %v235 = vadd.f32 %v229, %v233
        %s236 = scalar_lea.vmem %s184, 6 [#allocation2]
        %v237 = vld [vmem:[%s236] sm:$0x3]
        %vm238 = vcmp.eq.s32.totalorder %v220, 3
        %v239 = vsel %vm238, %v237, 0.0
        %v240 = vadd.f32 %v234, %v237
        %v241 = vadd.f32 %v235, %v239
        %v242 = vmul.f32 %v240, 3.3333333e-06
        %v243 = vmul.f32 %v241, 0.99998665
        %v244 = vadd.f32 %v242, %v243
        %v245 = vadd.f32 %v244, 1e-05
        %v246 = vlog2.pop %v245
        %v247 = vmul.f32 %v246, 0.6931472
        %v248 = vsub.f32 1.0, %v245
        %v249 = vmul.f32 %v248, %v248
        %v250 = vmul.f32 %v249, %v247
        %v251 = vsub.f32 0.0, %v250
        %vm252 = vcmask 1041408
        %v253 = vsel %vm252, %v251, 0.0
        %v254 = vrot.slane %v253, 4
        %v255 = vadd.f32 %v253, %v254
        %v256 = vrot.slane %v255, 2
        %v257 = vadd.f32 %v255, %v256
        %v258 = vrot.slane %v257, 1
        %v259 = vadd.f32 %v257, %v258
        %p260 = scmp.eq.s32.totalorder %s27, 0
        // Predicated region
        $region37: #{tpu_custom_call.1} parent=27 // pred_check
          %p261 = pneg %p260
        $region38: #{tpu_custom_call.1} parent=27 // pred_check_branch
          %263 = sbr.rel (%p261) target = $region40
        $region39: #{tpu_custom_call.1} parent=27 // pred_region
          %264 = vst [vmem:[%s219] sm:$0x1] 0.0
        $region40: #{tpu_custom_call.1} parent=27 // pred_fallthru
          _
        %v265 = vld [vmem:[%s219] sm:$0x1]
        %v266 = vadd.f32 %v265, %v259
        %267 = vst [vmem:[%s219] sm:$0x1] %v266
        %s268 = sand.u32 %s98, 1
        %s269 = scalar_lea.sflag [#allocation4], %s268
        %s270 = sand.u32 %s98, 1
        %s271 = scalar_lea.vmem [#allocation7], %s270
        // Predicated region
        $region41: #{tpu_custom_call.1} parent=27 // pred_check
          %p272 = pneg %p108
        $region42: #{tpu_custom_call.1} parent=27 // pred_check_branch
          %274 = sbr.rel (%p272) target = $region44
        $region43: #{tpu_custom_call.1} parent=27 // pred_region
          %276 = vsyncadd %s269, 0
          %s277 = scalar_lea.hbm %s2, %s26
          %s279 = sshll.u32 %s271, 4
          %s280 = int_to_ptr.vmem [resolvable:$true] %s279
          %s281 = sshll.u32 %s277, 4
          %s282 = int_to_ptr.hbm [resolvable:$true] %s281
          %284 = dma.vmem_to_hbm [thread:$0]  %s280, 16, %s282, %s269
        $region44: #{tpu_custom_call.1} parent=27 // pred_fallthru
          _
      $region28: #{tpu_custom_call.1} parent=5 // pred_fallthru
        _
      %p285 = scmp.le.s32.totalorder 2, %s17
      // Predicated region
      $region45: #{tpu_custom_call.1} parent=5 // pred_check
        %p286 = pneg %p285
      $region46: #{tpu_custom_call.1} parent=5 // pred_check_branch
        %288 = sbr.rel (%p286) target = $region48
      $region47: #{tpu_custom_call.1} parent=5 // pred_region
        %s289 = ssub.s32 %s17, 2
        // Predicated region
        $region49: #{tpu_custom_call.1} parent=47 // pred_check
          %p290 = pneg %p114
        $region50: #{tpu_custom_call.1} parent=47 // pred_check_branch
          %292 = sbr.rel (%p290) target = $region52
        $region51: #{tpu_custom_call.1} parent=47 // pred_region
          %s293 = sand.u32 %s99, 1
          %s294 = scalar_lea.sflag [#allocation4], %s293
          %s295 = sand.u32 %s99, 1
          %s296 = scalar_lea.vmem [#allocation7], %s295
          %298 = dma.done %s294, 16
        $region52: #{tpu_custom_call.1} parent=47 // pred_fallthru
          _
      $region48: #{tpu_custom_call.1} parent=5 // pred_fallthru
        _
    $region6: #{tpu_custom_call.1} parent=1 // loop_footer
      %s21 = sadd.s32 1, %s17
    $region7: #{tpu_custom_call.1} parent=1 // loop_footer_branch
      %16 = sbr.rel target = $region3
    $region8: #{tpu_custom_call.1} parent=1 // loop_exit
      _
    %299 = vsyncpa [#allocation3], 1
    %s300 = scalar_lea.sflag [#allocation3], 1
    %301 = vsyncpa %s300, 1
    %302 = vsyncpa [#allocation6], 1
    %s303 = scalar_lea.sflag [#allocation6], 1
    %304 = vsyncpa %s303, 1
    %305 = vsyncpa [#allocation4], 1
    %s306 = scalar_lea.sflag [#allocation4], 1
    %307 = vsyncpa %s306, 1

</llo_original>
